<compile_context>
chip_gen: v6e
topology: v6e:2x2x1
jax: 0.10.0
libtpu: 0.0.40
codegen_flags: <defaults>
</compile_context>

<pallas_src>
import math
import jax
import jax.numpy as jnp
from jax.experimental import pallas as pl
from jax.experimental.pallas import tpu as pltpu


def _round_up(x, m):
    return ((x + m - 1) // m) * m


def mlp_kernel(x_ref,
               w1_ref, b1_ref,
               w2_ref, b2_ref,
               w3_ref, b3_ref,
               w4_ref, b4_ref,
               w5_ref, b5_ref,
               o_ref):
    # f32 load, bf16 cast in-kernel (VPU has slack); f32 accumulation / ReLU.
    x = x_ref[...].astype(jnp.bfloat16)                       # [TB, D_in]

    h = jnp.dot(x, w1_ref[...], preferred_element_type=jnp.float32) + b1_ref[...]
    h = jnp.maximum(h, 0.0)

    h = jnp.dot(h.astype(jnp.bfloat16), w2_ref[...],
                preferred_element_type=jnp.float32) + b2_ref[...]
    h = jnp.maximum(h, 0.0)

    h = jnp.dot(h.astype(jnp.bfloat16), w3_ref[...],
                preferred_element_type=jnp.float32) + b3_ref[...]
    h = jnp.maximum(h, 0.0)

    h = jnp.dot(h.astype(jnp.bfloat16), w4_ref[...],
                preferred_element_type=jnp.float32) + b4_ref[...]
    h = jnp.maximum(h, 0.0)

    h = jnp.dot(h.astype(jnp.bfloat16), w5_ref[...],
                preferred_element_type=jnp.float32) + b5_ref[...]

    o_ref[...] = h.astype(o_ref.dtype)                        # [TB, target_dim]


def prepare_params(params):
    """One-time packing (call once, NOT per forward).

    Zero-pads the hidden dimension to a multiple of 128 (lane-dense
    intermediates), casts weights to bf16 (MXU operands) and biases to f32.
    Exact w.r.t. the unpadded network: padded weight rows/cols and padded
    bias entries are zero, and ReLU(0) = 0 feeds zero weight rows.
    Returns a flat list [w1, b1, ..., w5, b5].
    """
    hidden = params[0][0].shape[1]
    hp = _round_up(hidden, 128)
    n = len(params)
    packed = []
    for li, (w, b) in enumerate(params):
        in_pad = 0 if li == 0 else hp - w.shape[0]        # first layer keeps d_in
        out_pad = 0 if li == n - 1 else hp - w.shape[1]   # last layer keeps target_dim
        w = jnp.pad(w, ((0, in_pad), (0, out_pad)))
        b = jnp.pad(b, ((0, 0), (0, out_pad)))
        packed += [w.astype(jnp.bfloat16), b.astype(jnp.float32)]
    return packed


def mult_out_regressor2(x, packed):
    """x: [B, input_dim] f32.  packed: output of prepare_params()."""
    B, d_in = x.shape
    hp = packed[0].shape[1]              # padded hidden width (multiple of 128)
    target_dim = packed[-2].shape[1]     # last-layer true output width

    # Batch tile: big tiles to amortize the ~0.35us per-step overhead, but
    # guarantee >=2 grid steps when B allows so both v7x TCs get work.
    TB = min(1024, _round_up(B, 8))
    if B >= 16:
        TB = min(TB, _round_up(pl.cdiv(B, 2), 8))
    B_pad = _round_up(B, TB)
    x_p = x if B_pad == B else jnp.pad(x, ((0, B_pad - B), (0, 0)))

    const_map = lambda i: (0, 0)         # weights/biases stay VMEM-resident
    in_specs = [pl.BlockSpec((TB, d_in), lambda i: (i, 0))]
    in_specs += [pl.BlockSpec(a.shape, const_map) for a in packed]

    wb_bytes = sum(a.size * a.dtype.itemsize for a in packed)
    flops = 2 * B_pad * (d_in * hp + 3 * hp * hp + hp * target_dim)
    # Weights counted once (constant index_map => single DMA); advisory only.
    bytes_accessed = x_p.size * 4 + wb_bytes + B_pad * target_dim * 4

    # Per-step VMEM: double-buffered x and output tiles + (double-buffered)
    # resident weights + headroom for intermediates / spills.
    vmem_limit = int(max(2 * TB * (d_in + target_dim) * 4 + 2 * wb_bytes
                         + 2 * TB * hp * 4 + (4 << 20),
                         16 << 20))

    out = pl.pallas_call(
        mlp_kernel,
        out_shape=jax.ShapeDtypeStruct((B_pad, target_dim), jnp.float32),
        grid=(pl.cdiv(B_pad, TB),),
        in_specs=in_specs,
        out_specs=pl.BlockSpec((TB, target_dim), lambda i: (i, 0)),
        compiler_params=pltpu.CompilerParams(
            dimension_semantics=("parallel",),
            vmem_limit_bytes=vmem_limit),
        cost_estimate=pl.CostEstimate(flops=flops, transcendentals=0,
                                      bytes_accessed=int(bytes_accessed)),
    )(x_p, *packed)

    return out[:B] if B_pad != B else out


def init_linear(key, in_features, out_features):
    """Deterministic init mimicking nn.Linear (uniform +/- 1/sqrt(fan_in)).
    Returns W [in, out] (pre-transposed) and b [1, out], both f32."""
    kw, kb = jax.random.split(key)
    bound = 1.0 / math.sqrt(in_features)
    w = jax.random.uniform(kw, (in_features, out_features), jnp.float32,
                           minval=-bound, maxval=bound)
    b = jax.random.uniform(kb, (1, out_features), jnp.float32,
                           minval=-bound, maxval=bound)
    return w, b


def reference_forward(x, params):
    """Same bf16-operand / f32-accumulate path as the kernel, in plain JAX,
    on the UNPADDED params (the zero padding in the kernel is exact)."""
    h = x
    for i, (w, b) in enumerate(params):
        h = jnp.dot(h.astype(jnp.bfloat16), w.astype(jnp.bfloat16),
                    preferred_element_type=jnp.float32) + b
        if i < len(params) - 1:
            h = jnp.maximum(h, 0.0)
    return h


if __name__ == "__main__":
    B = 8
    input_dim = 16
    hidden_dim = 32
    target_dim = 4

    key = jax.random.PRNGKey(0)
    kx, k1, k2, k3, k4, k5 = jax.random.split(key, 6)

    x = jax.random.normal(kx, (B, input_dim), jnp.float32)

    params = [
        init_linear(k1, input_dim, hidden_dim),   # fc1
        init_linear(k2, hidden_dim, hidden_dim),  # fc2
        init_linear(k3, hidden_dim, hidden_dim),  # fc3
        init_linear(k4, hidden_dim, hidden_dim),  # fc4
        init_linear(k5, hidden_dim, target_dim),  # fc5
    ]

    packed = prepare_params(params)               # one-time packing
    out = mult_out_regressor2(x, packed)
    out = jax.block_until_ready(out)

    ref = reference_forward(x, params)
    assert out.shape == (B, target_dim)
    assert jnp.allclose(out, ref, atol=1e-3, rtol=1e-3), (
        float(jnp.max(jnp.abs(out - ref))))

    print("KERNEL_OK")
</pallas_src>

<mosaic_0001>
module attributes {stable_mosaic.version = 11 : i64} {
  func.func @mlp_kernel(%arg0: i32, %arg1: memref<8x16xf32, #tpu.memory_space<vmem>>, %arg2: memref<16x128xbf16, #tpu.memory_space<vmem>>, %arg3: memref<1x128xf32, #tpu.memory_space<vmem>>, %arg4: memref<128x128xbf16, #tpu.memory_space<vmem>>, %arg5: memref<1x128xf32, #tpu.memory_space<vmem>>, %arg6: memref<128x128xbf16, #tpu.memory_space<vmem>>, %arg7: memref<1x128xf32, #tpu.memory_space<vmem>>, %arg8: memref<128x128xbf16, #tpu.memory_space<vmem>>, %arg9: memref<1x128xf32, #tpu.memory_space<vmem>>, %arg10: memref<128x4xbf16, #tpu.memory_space<vmem>>, %arg11: memref<1x4xf32, #tpu.memory_space<vmem>>, %arg12: memref<8x4xf32, #tpu.memory_space<vmem>>) attributes {dimension_semantics = [#tpu.dimension_semantics<parallel>], iteration_bounds = array<i64: 1>, scalar_prefetch = 0 : i64, scratch_operands = 0 : i64, tpu.core_type = #tpu.core_type<tc>, window_params = [{transform_indices = @transform_0, window_bounds = array<i64: 8, 16>}, {pipeline_mode = #tpu.pipeline_mode<synchronous>, transform_indices = @transform_1, window_bounds = array<i64: 16, 128>}, {pipeline_mode = #tpu.pipeline_mode<synchronous>, transform_indices = @transform_2, window_bounds = array<i64: 1, 128>}, {pipeline_mode = #tpu.pipeline_mode<synchronous>, transform_indices = @transform_3, window_bounds = array<i64: 128, 128>}, {pipeline_mode = #tpu.pipeline_mode<synchronous>, transform_indices = @transform_4, window_bounds = array<i64: 1, 128>}, {pipeline_mode = #tpu.pipeline_mode<synchronous>, transform_indices = @transform_5, window_bounds = array<i64: 128, 128>}, {pipeline_mode = #tpu.pipeline_mode<synchronous>, transform_indices = @transform_6, window_bounds = array<i64: 1, 128>}, {pipeline_mode = #tpu.pipeline_mode<synchronous>, transform_indices = @transform_7, window_bounds = array<i64: 128, 128>}, {pipeline_mode = #tpu.pipeline_mode<synchronous>, transform_indices = @transform_8, window_bounds = array<i64: 1, 128>}, {pipeline_mode = #tpu.pipeline_mode<synchronous>, transform_indices = @transform_9, window_bounds = array<i64: 128, 4>}, {pipeline_mode = #tpu.pipeline_mode<synchronous>, transform_indices = @transform_10, window_bounds = array<i64: 1, 4>}, {transform_indices = @transform_11, window_bounds = array<i64: 8, 4>}]} {
    %c0 = arith.constant 0 : index
    %c0_0 = arith.constant 0 : index
    %0 = vector.load %arg1[%c0, %c0_0] : memref<8x16xf32, #tpu.memory_space<vmem>>, vector<8x16xf32>
    %1 = arith.truncf %0 : vector<8x16xf32> to vector<8x16xbf16>
    %c0_1 = arith.constant 0 : index
    %c0_2 = arith.constant 0 : index
    %2 = vector.load %arg2[%c0_1, %c0_2] : memref<16x128xbf16, #tpu.memory_space<vmem>>, vector<16x128xbf16>
    %cst = arith.constant dense<0.000000e+00> : vector<8x128xf32>
    %3 = tpu.matmul %1, %2, %cst {dimension_numbers = #tpu.dot_dimension_numbers<[1], [0], [0], [1], [0, 0, 1, 1], [], []>} : vector<8x16xbf16>, vector<16x128xbf16>, vector<8x128xf32> -> vector<8x128xf32>
    %c0_3 = arith.constant 0 : index
    %c0_4 = arith.constant 0 : index
    %4 = vector.load %arg3[%c0_3, %c0_4] : memref<1x128xf32, #tpu.memory_space<vmem>>, vector<1x128xf32>
    %5 = vector.broadcast %4 : vector<1x128xf32> to vector<8x128xf32>
    %6 = arith.addf %3, %5 : vector<8x128xf32>
    %cst_5 = arith.constant 0.000000e+00 : f32
    %7 = vector.broadcast %cst_5 : f32 to vector<8x128xf32>
    %8 = arith.maximumf %6, %7 : vector<8x128xf32>
    %9 = arith.truncf %8 : vector<8x128xf32> to vector<8x128xbf16>
    %c0_6 = arith.constant 0 : index
    %c0_7 = arith.constant 0 : index
    %10 = vector.load %arg4[%c0_6, %c0_7] : memref<128x128xbf16, #tpu.memory_space<vmem>>, vector<128x128xbf16>
    %cst_8 = arith.constant dense<0.000000e+00> : vector<8x128xf32>
    %11 = tpu.matmul %9, %10, %cst_8 {dimension_numbers = #tpu.dot_dimension_numbers<[1], [0], [0], [1], [0, 0, 1, 1], [], []>} : vector<8x128xbf16>, vector<128x128xbf16>, vector<8x128xf32> -> vector<8x128xf32>
    %c0_9 = arith.constant 0 : index
    %c0_10 = arith.constant 0 : index
    %12 = vector.load %arg5[%c0_9, %c0_10] : memref<1x128xf32, #tpu.memory_space<vmem>>, vector<1x128xf32>
    %13 = vector.broadcast %12 : vector<1x128xf32> to vector<8x128xf32>
    %14 = arith.addf %11, %13 : vector<8x128xf32>
    %cst_11 = arith.constant 0.000000e+00 : f32
    %15 = vector.broadcast %cst_11 : f32 to vector<8x128xf32>
    %16 = arith.maximumf %14, %15 : vector<8x128xf32>
    %17 = arith.truncf %16 : vector<8x128xf32> to vector<8x128xbf16>
    %c0_12 = arith.constant 0 : index
    %c0_13 = arith.constant 0 : index
    %18 = vector.load %arg6[%c0_12, %c0_13] : memref<128x128xbf16, #tpu.memory_space<vmem>>, vector<128x128xbf16>
    %cst_14 = arith.constant dense<0.000000e+00> : vector<8x128xf32>
    %19 = tpu.matmul %17, %18, %cst_14 {dimension_numbers = #tpu.dot_dimension_numbers<[1], [0], [0], [1], [0, 0, 1, 1], [], []>} : vector<8x128xbf16>, vector<128x128xbf16>, vector<8x128xf32> -> vector<8x128xf32>
    %c0_15 = arith.constant 0 : index
    %c0_16 = arith.constant 0 : index
    %20 = vector.load %arg7[%c0_15, %c0_16] : memref<1x128xf32, #tpu.memory_space<vmem>>, vector<1x128xf32>
    %21 = vector.broadcast %20 : vector<1x128xf32> to vector<8x128xf32>
    %22 = arith.addf %19, %21 : vector<8x128xf32>
    %cst_17 = arith.constant 0.000000e+00 : f32
    %23 = vector.broadcast %cst_17 : f32 to vector<8x128xf32>
    %24 = arith.maximumf %22, %23 : vector<8x128xf32>
    %25 = arith.truncf %24 : vector<8x128xf32> to vector<8x128xbf16>
    %c0_18 = arith.constant 0 : index
    %c0_19 = arith.constant 0 : index
    %26 = vector.load %arg8[%c0_18, %c0_19] : memref<128x128xbf16, #tpu.memory_space<vmem>>, vector<128x128xbf16>
    %cst_20 = arith.constant dense<0.000000e+00> : vector<8x128xf32>
    %27 = tpu.matmul %25, %26, %cst_20 {dimension_numbers = #tpu.dot_dimension_numbers<[1], [0], [0], [1], [0, 0, 1, 1], [], []>} : vector<8x128xbf16>, vector<128x128xbf16>, vector<8x128xf32> -> vector<8x128xf32>
    %c0_21 = arith.constant 0 : index
    %c0_22 = arith.constant 0 : index
    %28 = vector.load %arg9[%c0_21, %c0_22] : memref<1x128xf32, #tpu.memory_space<vmem>>, vector<1x128xf32>
    %29 = vector.broadcast %28 : vector<1x128xf32> to vector<8x128xf32>
    %30 = arith.addf %27, %29 : vector<8x128xf32>
    %cst_23 = arith.constant 0.000000e+00 : f32
    %31 = vector.broadcast %cst_23 : f32 to vector<8x128xf32>
    %32 = arith.maximumf %30, %31 : vector<8x128xf32>
    %33 = arith.truncf %32 : vector<8x128xf32> to vector<8x128xbf16>
    %c0_24 = arith.constant 0 : index
    %c0_25 = arith.constant 0 : index
    %34 = vector.load %arg10[%c0_24, %c0_25] : memref<128x4xbf16, #tpu.memory_space<vmem>>, vector<128x4xbf16>
    %cst_26 = arith.constant dense<0.000000e+00> : vector<8x4xf32>
    %35 = tpu.matmul %33, %34, %cst_26 {dimension_numbers = #tpu.dot_dimension_numbers<[1], [0], [0], [1], [0, 0, 1, 1], [], []>} : vector<8x128xbf16>, vector<128x4xbf16>, vector<8x4xf32> -> vector<8x4xf32>
    %c0_27 = arith.constant 0 : index
    %c0_28 = arith.constant 0 : index
    %36 = vector.load %arg11[%c0_27, %c0_28] : memref<1x4xf32, #tpu.memory_space<vmem>>, vector<1x4xf32>
    %37 = vector.broadcast %36 : vector<1x4xf32> to vector<8x4xf32>
    %38 = arith.addf %35, %37 : vector<8x4xf32>
    %c0_29 = arith.constant 0 : index
    %c0_30 = arith.constant 0 : index
    %39 = vector.load %arg12[%c0_29, %c0_30] : memref<8x4xf32, #tpu.memory_space<vmem>>, vector<8x4xf32>
    tpu.vector_store %arg12[%c0_29, %c0_30], %38 {strides = array<i32>} : memref<8x4xf32, #tpu.memory_space<vmem>>, vector<8x4xf32>,
    return
  }
  func.func @transform_0(%arg0: i32) -> (i32, i32) {
    %c0_i32 = arith.constant 0 : i32
    %c0_i32_0 = arith.constant 0 : i32
    return %arg0, %c0_i32 : i32, i32
  }
  func.func @transform_1(%arg0: i32) -> (i32, i32) {
    %c0_i32 = arith.constant 0 : i32
    %c0_i32_0 = arith.constant 0 : i32
    %c0_i32_1 = arith.constant 0 : i32
    return %c0_i32, %c0_i32_0 : i32, i32
  }
  func.func @transform_2(%arg0: i32) -> (i32, i32) {
    %c0_i32 = arith.constant 0 : i32
    %c0_i32_0 = arith.constant 0 : i32
    %c0_i32_1 = arith.constant 0 : i32
    return %c0_i32, %c0_i32_0 : i32, i32
  }
  func.func @transform_3(%arg0: i32) -> (i32, i32) {
    %c0_i32 = arith.constant 0 : i32
    %c0_i32_0 = arith.constant 0 : i32
    %c0_i32_1 = arith.constant 0 : i32
    return %c0_i32, %c0_i32_0 : i32, i32
  }
  func.func @transform_4(%arg0: i32) -> (i32, i32) {
    %c0_i32 = arith.constant 0 : i32
    %c0_i32_0 = arith.constant 0 : i32
    %c0_i32_1 = arith.constant 0 : i32
    return %c0_i32, %c0_i32_0 : i32, i32
  }
  func.func @transform_5(%arg0: i32) -> (i32, i32) {
    %c0_i32 = arith.constant 0 : i32
    %c0_i32_0 = arith.constant 0 : i32
    %c0_i32_1 = arith.constant 0 : i32
    return %c0_i32, %c0_i32_0 : i32, i32
  }
  func.func @transform_6(%arg0: i32) -> (i32, i32) {
    %c0_i32 = arith.constant 0 : i32
    %c0_i32_0 = arith.constant 0 : i32
    %c0_i32_1 = arith.constant 0 : i32
    return %c0_i32, %c0_i32_0 : i32, i32
  }
  func.func @transform_7(%arg0: i32) -> (i32, i32) {
    %c0_i32 = arith.constant 0 : i32
    %c0_i32_0 = arith.constant 0 : i32
    %c0_i32_1 = arith.constant 0 : i32
    return %c0_i32, %c0_i32_0 : i32, i32
  }
  func.func @transform_8(%arg0: i32) -> (i32, i32) {
    %c0_i32 = arith.constant 0 : i32
    %c0_i32_0 = arith.constant 0 : i32
    %c0_i32_1 = arith.constant 0 : i32
    return %c0_i32, %c0_i32_0 : i32, i32
  }
  func.func @transform_9(%arg0: i32) -> (i32, i32) {
    %c0_i32 = arith.constant 0 : i32
    %c0_i32_0 = arith.constant 0 : i32
    %c0_i32_1 = arith.constant 0 : i32
    return %c0_i32, %c0_i32_0 : i32, i32
  }
  func.func @transform_10(%arg0: i32) -> (i32, i32) {
    %c0_i32 = arith.constant 0 : i32
    %c0_i32_0 = arith.constant 0 : i32
    %c0_i32_1 = arith.constant 0 : i32
    return %c0_i32, %c0_i32_0 : i32, i32
  }
  func.func @transform_11(%arg0: i32) -> (i32, i32) {
    %c0_i32 = arith.constant 0 : i32
    %c0_i32_0 = arith.constant 0 : i32
    return %arg0, %c0_i32 : i32, i32
  }
}

</mosaic_0001>

<llo_original>
// kernel: tpu_custom_call.1
$region0: #{tpu_custom_call.1}
  #allocation0 [shape = 'u32[]', space=smem, size = 0x4, offset = 0x4, fixed_abs, tag = 'smem constant byte address 0x4 - core index']
  #allocation1 [shape = 'u32[144,128]{1,0:T(1,128)}', space=vmem, size = 0x12000, scoped, tag = 'internal scratch']
  %s0 = inlined_call_operand.hbm [shape: f32[8,16], index: 0, kind: input, shape index: {}]
  %s1 = inlined_call_operand.hbm [shape: bf16[16,128], index: 1, kind: input, shape index: {}]
  %s2 = inlined_call_operand.vmem [shape: f32[1,128], index: 2, kind: input, shape index: {}]
  %s3 = inlined_call_operand.vmem [shape: bf16[128,128], index: 3, kind: input, shape index: {}]
  %s4 = inlined_call_operand.vmem [shape: f32[1,128], index: 4, kind: input, shape index: {}]
  %s5 = inlined_call_operand.hbm [shape: bf16[128,128], index: 5, kind: input, shape index: {}]
  %s6 = inlined_call_operand.vmem [shape: f32[1,128], index: 6, kind: input, shape index: {}]
  %s7 = inlined_call_operand.hbm [shape: bf16[128,128], index: 7, kind: input, shape index: {}]
  %s8 = inlined_call_operand.vmem [shape: f32[1,128], index: 8, kind: input, shape index: {}]
  %s9 = inlined_call_operand.vmem [shape: bf16[128,4], index: 9, kind: input, shape index: {}]
  %s10 = inlined_call_operand.vmem [shape: f32[1,4], index: 10, kind: input, shape index: {}]
  %s11 = inlined_call_operand.vmem [shape: f32[8,4], index: 11, kind: output, shape index: {}]
  %s12 = sld [smem:[#allocation0]]
  $region70: #{tpu_custom_call.1} parent=0
    _
  %s14 = ssub.s32 1, %s12
  %s15 = scalar_select 0, %s14, %s12
  $region1: #{tpu_custom_call.1} parent=0
    #allocation2 [shape = 'u8[4096]{0}', space=vmem, size = 0x1000, scoped, tag = 'input window, operand 0, single buffered']
    #allocation3 [shape = 's32[1]{0}', space=sflag, size = 0x4, scoped, tag = 'scoped memory for tpu_custom_call.1']
    #allocation4 [shape = 'u8[4096]{0}', space=vmem, size = 0x1000, scoped, tag = 'input window, operand 1, single buffered']
    #allocation5 [shape = 's32[1]{0}', space=sflag, size = 0x4, scoped, tag = 'scoped memory for tpu_custom_call.1']
    #allocation6 [shape = 'u8[32768]{0}', space=vmem, size = 0x8000, scoped, tag = 'input window, operand 5, single buffered']
    #allocation7 [shape = 'u8[32768]{0}', space=vmem, size = 0x8000, scoped, tag = 'input window, operand 7, single buffered']
    #allocation8 [shape = 's32[1]{0}', space=sflag, size = 0x4, scoped, tag = 'scoped memory for tpu_custom_call.1']
    %16 = vsyncpa [#allocation3], 0
    %17 = vsyncpa [#allocation5], 0
    %18 = vsyncpa [#allocation8], 0
    // Predicated region
    $region2: #{tpu_custom_call.1} parent=1 // pred_check
      _
    $region3: #{tpu_custom_call.1} parent=1 // pred_check_branch
      %20 = sbr.rel (0) target = $region5
    $region4: #{tpu_custom_call.1} parent=1 // pred_region
      %s22 = ssub.s32 128, 128
      %23 = vsyncadd [#allocation3], %s22
      %s25 = sshll.u32 [#allocation2], 4
      %s26 = int_to_ptr.vmem [resolvable:$true] %s25
      %28 = dma.hbm_to_vmem [thread:$0]  %s0, 128, %s26, [#allocation3]
    $region5: #{tpu_custom_call.1} parent=1 // pred_fallthru
      _
    // Predicated region
    $region6: #{tpu_custom_call.1} parent=1 // pred_check
      _
    $region7: #{tpu_custom_call.1} parent=1 // pred_check_branch
      %30 = sbr.rel (0) target = $region9
    $region8: #{tpu_custom_call.1} parent=1 // pred_region
      %s32 = ssub.s32 128, 128
      %33 = vsyncadd [#allocation5], %s32
      %s34 = sshll.u32 [#allocation4], 4
      %s35 = int_to_ptr.vmem [resolvable:$true] %s34
      %40 = dma.hbm_to_vmem [thread:$0]  %s1, 128, %s35, [#allocation5], 64, 64, 4
    $region9: #{tpu_custom_call.1} parent=1 // pred_fallthru
      _
    // Predicated region
    $region10: #{tpu_custom_call.1} parent=1 // pred_check
      _
    $region11: #{tpu_custom_call.1} parent=1 // pred_check_branch
      %42 = sbr.rel (0) target = $region13
    $region12: #{tpu_custom_call.1} parent=1 // pred_region
      _
    $region13: #{tpu_custom_call.1} parent=1 // pred_fallthru
      _
    // Predicated region
    $region14: #{tpu_custom_call.1} parent=1 // pred_check
      _
    $region15: #{tpu_custom_call.1} parent=1 // pred_check_branch
      %44 = sbr.rel (0) target = $region17
    $region16: #{tpu_custom_call.1} parent=1 // pred_region
      _
    $region17: #{tpu_custom_call.1} parent=1 // pred_fallthru
      _
    // Predicated region
    $region18: #{tpu_custom_call.1} parent=1 // pred_check
      _
    $region19: #{tpu_custom_call.1} parent=1 // pred_check_branch
      %46 = sbr.rel (0) target = $region21
    $region20: #{tpu_custom_call.1} parent=1 // pred_region
      _
    $region21: #{tpu_custom_call.1} parent=1 // pred_fallthru
      _
    // Predicated region
    $region22: #{tpu_custom_call.1} parent=1 // pred_check
      _
    $region23: #{tpu_custom_call.1} parent=1 // pred_check_branch
      %48 = sbr.rel (0) target = $region25
    $region24: #{tpu_custom_call.1} parent=1 // pred_region
      %s50 = ssub.s32 1024, 1024
      %51 = vsyncadd [#allocation5], %s50
      %s52 = sshll.u32 [#allocation6], 4
      %s53 = int_to_ptr.vmem [resolvable:$true] %s52
      %58 = dma.hbm_to_vmem [thread:$0]  %s5, 1024, %s53, [#allocation5], 64, 64, 4
    $region25: #{tpu_custom_call.1} parent=1 // pred_fallthru
      _
    // Predicated region
    $region26: #{tpu_custom_call.1} parent=1 // pred_check
      _
    $region27: #{tpu_custom_call.1} parent=1 // pred_check_branch
      %60 = sbr.rel (0) target = $region29
    $region28: #{tpu_custom_call.1} parent=1 // pred_region
      _
    $region29: #{tpu_custom_call.1} parent=1 // pred_fallthru
      _
    // Predicated region
    $region30: #{tpu_custom_call.1} parent=1 // pred_check
      _
    $region31: #{tpu_custom_call.1} parent=1 // pred_check_branch
      %62 = sbr.rel (0) target = $region33
    $region32: #{tpu_custom_call.1} parent=1 // pred_region
      %s64 = ssub.s32 1024, 1024
      %65 = vsyncadd [#allocation8], %s64
      %s66 = sshll.u32 [#allocation7], 4
      %s67 = int_to_ptr.vmem [resolvable:$true] %s66
      %72 = dma.hbm_to_vmem [thread:$0]  %s7, 1024, %s67, [#allocation8], 64, 64, 4
    $region33: #{tpu_custom_call.1} parent=1 // pred_fallthru
      _
    // Predicated region
    $region34: #{tpu_custom_call.1} parent=1 // pred_check
      _
    $region35: #{tpu_custom_call.1} parent=1 // pred_check_branch
      %74 = sbr.rel (0) target = $region37
    $region36: #{tpu_custom_call.1} parent=1 // pred_region
      _
    $region37: #{tpu_custom_call.1} parent=1 // pred_fallthru
      _
    // Predicated region
    $region38: #{tpu_custom_call.1} parent=1 // pred_check
      _
    $region39: #{tpu_custom_call.1} parent=1 // pred_check_branch
      %76 = sbr.rel (0) target = $region41
    $region40: #{tpu_custom_call.1} parent=1 // pred_region
      _
    $region41: #{tpu_custom_call.1} parent=1 // pred_fallthru
      _
    // Predicated region
    $region42: #{tpu_custom_call.1} parent=1 // pred_check
      _
    $region43: #{tpu_custom_call.1} parent=1 // pred_check_branch
      %78 = sbr.rel (0) target = $region45
    $region44: #{tpu_custom_call.1} parent=1 // pred_region
      _
    $region45: #{tpu_custom_call.1} parent=1 // pred_fallthru
      _
    // Predicated region
    $region46: #{tpu_custom_call.1} parent=1 // pred_check
      _
    $region47: #{tpu_custom_call.1} parent=1 // pred_check_branch
      %80 = sbr.rel (0) target = $region49
    $region48: #{tpu_custom_call.1} parent=1 // pred_region
      %81 = dma.done [#allocation3], 128
    $region49: #{tpu_custom_call.1} parent=1 // pred_fallthru
      _
    // Predicated region
    $region50: #{tpu_custom_call.1} parent=1 // pred_check
      _
    $region51: #{tpu_custom_call.1} parent=1 // pred_check_branch
      %83 = sbr.rel (0) target = $region53
    $region52: #{tpu_custom_call.1} parent=1 // pred_region
      %84 = dma.done [#allocation5], 128
    $region53: #{tpu_custom_call.1} parent=1 // pred_fallthru
      _
    // Predicated region
    $region54: #{tpu_custom_call.1} parent=1 // pred_check
      _
    $region55: #{tpu_custom_call.1} parent=1 // pred_check_branch
      %86 = sbr.rel (0) target = $region57
    $region56: #{tpu_custom_call.1} parent=1 // pred_region
      %87 = dma.done [#allocation5], 1024
    $region57: #{tpu_custom_call.1} parent=1 // pred_fallthru
      _
    // Predicated region
    $region58: #{tpu_custom_call.1} parent=1 // pred_check
      _
    $region59: #{tpu_custom_call.1} parent=1 // pred_check_branch
      %89 = sbr.rel (0) target = $region61
    $region60: #{tpu_custom_call.1} parent=1 // pred_region
      %90 = dma.done [#allocation8], 1024
    $region61: #{tpu_custom_call.1} parent=1 // pred_fallthru
      _
    %v92 = vld [vmem:[#allocation2] sm:$0xff]
    %v93 = vpack.c.bf16 %v92, %v92
    %v94 = vld [vmem:[#allocation4] sm:$0xf]
    %v95 = vld [vmem:[#allocation4 + $0x4] sm:$0xf]
    %v96 = vld [vmem:[%s2] sm:$0x1]
    %v98 = vlaneseq
    %v99 = vshrl.u32 %v98, 7
    %v100 = vsub.s32 0, %v99
    %v101 = vrot.slane %v96, %v100
    %v105 = vunpack.c.l.b16 %v94
    %v106 = vunpack.c.l.b16 %v95
    %v107 = vpack.c.b16 %v106, %v105
    %vm109 = vcmask 130048
    %v111 = vsel %vm109, %v93, 0
    %113 = vmatprep.subr.bf16.mxu0 0
    %114 = vmatpush1.bf16.msra.mxu0 0
    %115 = vmatprep.subr.bf16.mxu0 0
    %116 = vmatpush1.bf16.msra.mxu0 0
    %117 = vmatprep.subr.bf16.mxu0 0
    %118 = vmatpush1.bf16.msra.mxu0 0
    %119 = vmatprep.subr.bf16.mxu0 0
    %120 = vmatpush1.bf16.msra.mxu0 0
    %121 = vmatprep.subr.bf16.mxu0 0
    %122 = vmatpush1.bf16.msra.mxu0 0
    %123 = vmatprep.subr.bf16.mxu0 0
    %124 = vmatpush1.bf16.msra.mxu0 0
    %125 = vmatprep.subr.bf16.mxu0 0
    %126 = vmatpush1.bf16.msra.mxu0 0
    %127 = vmatprep.subr.bf16.mxu0 0
    %128 = vmatpush1.bf16.msra.mxu0 %v107
    %129 = vmatprep.subr.bf16.mxu0 0
    %130 = vmatpush2.bf16.msra.mxu0 0
    %131 = vmatprep.subr.bf16.mxu0 0
    %132 = vmatpush2.bf16.msra.mxu0 0
    %133 = vmatprep.subr.bf16.mxu0 0
    %134 = vmatpush2.bf16.msra.mxu0 0
    %135 = vmatprep.subr.bf16.mxu0 0
    %136 = vmatpush2.bf16.msra.mxu0 0
    %137 = vmatprep.subr.bf16.mxu0 0
    %138 = vmatpush2.bf16.msra.mxu0 0
    %139 = vmatprep.subr.bf16.mxu0 0
    %140 = vmatpush2.bf16.msra.mxu0 0
    %141 = vmatprep.subr.bf16.mxu0 0
    %142 = vmatpush2.bf16.msra.mxu0 0
    %143 = vmatprep.subr.bf16.mxu0 0
    %144 = vmatpush2.bf16.msra.mxu0 0
    %145 = vmatprep.mubr.bf16.mxu0 0
    %146 = vmatmul.mubr.bf16.gmra.mxu0 %v111
    %v147 = vpop.f32.mrf.mxu0
    %v148 = vadd.f32 %v101, %v147
    %v149 = vpop.f32.mrf.mxu0
    %v150 = vpop.f32.mrf.mxu0
    %v151 = vpop.f32.mrf.mxu0
    %152 = vdwg.mxu0
    %v153 = vmax.f32 %v148, 0.0
    %v154 = vpack.c.bf16 %v153, %v153
    %v155 = vld [vmem:[%s3] sm:$0xf]
    %v156 = vld [vmem:[%s3 + $0x4] sm:$0xf]
    %v157 = vld [vmem:[%s3 + $0x8] sm:$0xf]
    %v158 = vld [vmem:[%s3 + $0xc] sm:$0xf]
    %v159 = vld [vmem:[%s3 + $0x10] sm:$0xf]
    %v160 = vld [vmem:[%s3 + $0x14] sm:$0xf]
    %v161 = vld [vmem:[%s3 + $0x18] sm:$0xf]
    %v162 = vld [vmem:[%s3 + $0x1c] sm:$0xf]
    %v163 = vld [vmem:[%s3 + $0x20] sm:$0xf]
    %v164 = vld [vmem:[%s3 + $0x24] sm:$0xf]
    %v165 = vld [vmem:[%s3 + $0x28] sm:$0xf]
    %v166 = vld [vmem:[%s3 + $0x2c] sm:$0xf]
    %v167 = vld [vmem:[%s3 + $0x30] sm:$0xf]
    %v168 = vld [vmem:[%s3 + $0x34] sm:$0xf]
    %v169 = vld [vmem:[%s3 + $0x38] sm:$0xf]
    %v170 = vld [vmem:[%s3 + $0x3c] sm:$0xf]
    %v171 = vld [vmem:[%s4] sm:$0x1]
    %v173 = vlaneseq
    %v174 = vshrl.u32 %v173, 7
    %v175 = vsub.s32 0, %v174
    %v176 = vrot.slane %v171, %v175
    %v194 = vunpack.c.l.b16 %v155
    %v195 = vunpack.c.l.b16 %v156
    %v196 = vunpack.c.l.b16 %v157
    %v197 = vunpack.c.l.b16 %v158
    %v198 = vunpack.c.l.b16 %v159
    %v199 = vunpack.c.l.b16 %v160
    %v200 = vunpack.c.l.b16 %v161
    %v201 = vunpack.c.l.b16 %v162
    %v202 = vunpack.c.l.b16 %v163
    %v203 = vunpack.c.l.b16 %v164
    %v204 = vunpack.c.l.b16 %v165
    %v205 = vunpack.c.l.b16 %v166
    %v206 = vunpack.c.l.b16 %v167
    %v207 = vunpack.c.l.b16 %v168
    %v208 = vunpack.c.l.b16 %v169
    %v209 = vunpack.c.l.b16 %v170
    %v210 = vpack.c.b16 %v195, %v194
    %v211 = vpack.c.b16 %v197, %v196
    %v212 = vpack.c.b16 %v199, %v198
    %v213 = vpack.c.b16 %v201, %v200
    %v214 = vpack.c.b16 %v203, %v202
    %v215 = vpack.c.b16 %v205, %v204
    %v216 = vpack.c.b16 %v207, %v206
    %v217 = vpack.c.b16 %v209, %v208
    %226 = vmatprep.subr.bf16.mxu0 0
    %227 = vmatpush1.bf16.msra.mxu0 %v217
    %228 = vmatprep.subr.bf16.mxu0 0
    %229 = vmatpush1.bf16.msra.mxu0 %v216
    %230 = vmatprep.subr.bf16.mxu0 0
    %231 = vmatpush1.bf16.msra.mxu0 %v215
    %232 = vmatprep.subr.bf16.mxu0 0
    %233 = vmatpush1.bf16.msra.mxu0 %v214
    %234 = vmatprep.subr.bf16.mxu0 0
    %235 = vmatpush1.bf16.msra.mxu0 %v213
    %236 = vmatprep.subr.bf16.mxu0 0
    %237 = vmatpush1.bf16.msra.mxu0 %v212
    %238 = vmatprep.subr.bf16.mxu0 0
    %239 = vmatpush1.bf16.msra.mxu0 %v211
    %240 = vmatprep.subr.bf16.mxu0 0
    %241 = vmatpush1.bf16.msra.mxu0 %v210
    %242 = vmatprep.subr.bf16.mxu0 0
    %243 = vmatpush2.bf16.msra.mxu0 0
    %244 = vmatprep.subr.bf16.mxu0 0
    %245 = vmatpush2.bf16.msra.mxu0 0
    %246 = vmatprep.subr.bf16.mxu0 0
    %247 = vmatpush2.bf16.msra.mxu0 0
    %248 = vmatprep.subr.bf16.mxu0 0
    %249 = vmatpush2.bf16.msra.mxu0 0
    %250 = vmatprep.subr.bf16.mxu0 0
    %251 = vmatpush2.bf16.msra.mxu0 0
    %252 = vmatprep.subr.bf16.mxu0 0
    %253 = vmatpush2.bf16.msra.mxu0 0
    %254 = vmatprep.subr.bf16.mxu0 0
    %255 = vmatpush2.bf16.msra.mxu0 0
    %256 = vmatprep.subr.bf16.mxu0 0
    %257 = vmatpush2.bf16.msra.mxu0 0
    %258 = vmatprep.mubr.bf16.mxu0 0
    %259 = vmatmul.mubr.bf16.gmra.mxu0 %v154
    %v260 = vpop.f32.mrf.mxu0
    %v261 = vadd.f32 %v176, %v260
    %v262 = vpop.f32.mrf.mxu0
    %v263 = vpop.f32.mrf.mxu0
    %v264 = vpop.f32.mrf.mxu0
    %265 = vdwg.mxu0
    %v266 = vmax.f32 %v261, 0.0
    %v267 = vpack.c.bf16 %v266, %v266
    %v268 = vld [vmem:[#allocation6] sm:$0xf]
    %v269 = vld [vmem:[#allocation6 + $0x4] sm:$0xf]
    %v270 = vld [vmem:[#allocation6 + $0x8] sm:$0xf]
    %v271 = vld [vmem:[#allocation6 + $0xc] sm:$0xf]
    %v272 = vld [vmem:[#allocation6 + $0x10] sm:$0xf]
    %v273 = vld [vmem:[#allocation6 + $0x14] sm:$0xf]
    %v274 = vld [vmem:[#allocation6 + $0x18] sm:$0xf]
    %v275 = vld [vmem:[#allocation6 + $0x1c] sm:$0xf]
    %v276 = vld [vmem:[#allocation6 + $0x20] sm:$0xf]
    %v277 = vld [vmem:[#allocation6 + $0x24] sm:$0xf]
    %v278 = vld [vmem:[#allocation6 + $0x28] sm:$0xf]
    %v279 = vld [vmem:[#allocation6 + $0x2c] sm:$0xf]
    %v280 = vld [vmem:[#allocation6 + $0x30] sm:$0xf]
    %v281 = vld [vmem:[#allocation6 + $0x34] sm:$0xf]
    %v282 = vld [vmem:[#allocation6 + $0x38] sm:$0xf]
    %v283 = vld [vmem:[#allocation6 + $0x3c] sm:$0xf]
    %v284 = vld [vmem:[%s6] sm:$0x1]
    %v286 = vlaneseq
    %v287 = vshrl.u32 %v286, 7
    %v288 = vsub.s32 0, %v287
    %v289 = vrot.slane %v284, %v288
    %v307 = vunpack.c.l.b16 %v268
    %v308 = vunpack.c.l.b16 %v269
    %v309 = vunpack.c.l.b16 %v270
    %v310 = vunpack.c.l.b16 %v271
    %v311 = vunpack.c.l.b16 %v272
    %v312 = vunpack.c.l.b16 %v273
    %v313 = vunpack.c.l.b16 %v274
    %v314 = vunpack.c.l.b16 %v275
    %v315 = vunpack.c.l.b16 %v276
    %v316 = vunpack.c.l.b16 %v277
    %v317 = vunpack.c.l.b16 %v278
    %v318 = vunpack.c.l.b16 %v279
    %v319 = vunpack.c.l.b16 %v280
    %v320 = vunpack.c.l.b16 %v281
    %v321 = vunpack.c.l.b16 %v282
    %v322 = vunpack.c.l.b16 %v283
    %v323 = vpack.c.b16 %v308, %v307
    %v324 = vpack.c.b16 %v310, %v309
    %v325 = vpack.c.b16 %v312, %v311
    %v326 = vpack.c.b16 %v314, %v313
    %v327 = vpack.c.b16 %v316, %v315
    %v328 = vpack.c.b16 %v318, %v317
    %v329 = vpack.c.b16 %v320, %v319
    %v330 = vpack.c.b16 %v322, %v321
    %339 = vmatprep.subr.bf16.mxu0 0
    %340 = vmatpush1.bf16.msra.mxu0 %v330
    %341 = vmatprep.subr.bf16.mxu0 0
    %342 = vmatpush1.bf16.msra.mxu0 %v329
    %343 = vmatprep.subr.bf16.mxu0 0
    %344 = vmatpush1.bf16.msra.mxu0 %v328
    %345 = vmatprep.subr.bf16.mxu0 0
    %346 = vmatpush1.bf16.msra.mxu0 %v327
    %347 = vmatprep.subr.bf16.mxu0 0
    %348 = vmatpush1.bf16.msra.mxu0 %v326
    %349 = vmatprep.subr.bf16.mxu0 0
    %350 = vmatpush1.bf16.msra.mxu0 %v325
    %351 = vmatprep.subr.bf16.mxu0 0
    %352 = vmatpush1.bf16.msra.mxu0 %v324
    %353 = vmatprep.subr.bf16.mxu0 0
    %354 = vmatpush1.bf16.msra.mxu0 %v323
    %355 = vmatprep.subr.bf16.mxu0 0
    %356 = vmatpush2.bf16.msra.mxu0 0
    %357 = vmatprep.subr.bf16.mxu0 0
    %358 = vmatpush2.bf16.msra.mxu0 0
    %359 = vmatprep.subr.bf16.mxu0 0
    %360 = vmatpush2.bf16.msra.mxu0 0
    %361 = vmatprep.subr.bf16.mxu0 0
    %362 = vmatpush2.bf16.msra.mxu0 0
    %363 = vmatprep.subr.bf16.mxu0 0
    %364 = vmatpush2.bf16.msra.mxu0 0
    %365 = vmatprep.subr.bf16.mxu0 0
    %366 = vmatpush2.bf16.msra.mxu0 0
    %367 = vmatprep.subr.bf16.mxu0 0
    %368 = vmatpush2.bf16.msra.mxu0 0
    %369 = vmatprep.subr.bf16.mxu0 0
    %370 = vmatpush2.bf16.msra.mxu0 0
    %371 = vmatprep.mubr.bf16.mxu0 0
    %372 = vmatmul.mubr.bf16.gmra.mxu0 %v267
    %v373 = vpop.f32.mrf.mxu0
    %v374 = vadd.f32 %v289, %v373
    %v375 = vpop.f32.mrf.mxu0
    %v376 = vpop.f32.mrf.mxu0
    %v377 = vpop.f32.mrf.mxu0
    %378 = vdwg.mxu0
    %v379 = vmax.f32 %v374, 0.0
    %v380 = vpack.c.bf16 %v379, %v379
    %v381 = vld [vmem:[#allocation7] sm:$0xf]
    %v382 = vld [vmem:[#allocation7 + $0x4] sm:$0xf]
    %v383 = vld [vmem:[#allocation7 + $0x8] sm:$0xf]
    %v384 = vld [vmem:[#allocation7 + $0xc] sm:$0xf]
    %v385 = vld [vmem:[#allocation7 + $0x10] sm:$0xf]
    %v386 = vld [vmem:[#allocation7 + $0x14] sm:$0xf]
    %v387 = vld [vmem:[#allocation7 + $0x18] sm:$0xf]
    %v388 = vld [vmem:[#allocation7 + $0x1c] sm:$0xf]
    %v389 = vld [vmem:[#allocation7 + $0x20] sm:$0xf]
    %v390 = vld [vmem:[#allocation7 + $0x24] sm:$0xf]
    %v391 = vld [vmem:[#allocation7 + $0x28] sm:$0xf]
    %v392 = vld [vmem:[#allocation7 + $0x2c] sm:$0xf]
    %v393 = vld [vmem:[#allocation7 + $0x30] sm:$0xf]
    %v394 = vld [vmem:[#allocation7 + $0x34] sm:$0xf]
    %v395 = vld [vmem:[#allocation7 + $0x38] sm:$0xf]
    %v396 = vld [vmem:[#allocation7 + $0x3c] sm:$0xf]
    %v397 = vld [vmem:[%s8] sm:$0x1]
    %v399 = vlaneseq
    %v400 = vshrl.u32 %v399, 7
    %v401 = vsub.s32 0, %v400
    %v402 = vrot.slane %v397, %v401
    %v420 = vunpack.c.l.b16 %v381
    %v421 = vunpack.c.l.b16 %v382
    %v422 = vunpack.c.l.b16 %v383
    %v423 = vunpack.c.l.b16 %v384
    %v424 = vunpack.c.l.b16 %v385
    %v425 = vunpack.c.l.b16 %v386
    %v426 = vunpack.c.l.b16 %v387
    %v427 = vunpack.c.l.b16 %v388
    %v428 = vunpack.c.l.b16 %v389
    %v429 = vunpack.c.l.b16 %v390
    %v430 = vunpack.c.l.b16 %v391
    %v431 = vunpack.c.l.b16 %v392
    %v432 = vunpack.c.l.b16 %v393
    %v433 = vunpack.c.l.b16 %v394
    %v434 = vunpack.c.l.b16 %v395
    %v435 = vunpack.c.l.b16 %v396
    %v436 = vpack.c.b16 %v421, %v420
    %v437 = vpack.c.b16 %v423, %v422
    %v438 = vpack.c.b16 %v425, %v424
    %v439 = vpack.c.b16 %v427, %v426
    %v440 = vpack.c.b16 %v429, %v428
    %v441 = vpack.c.b16 %v431, %v430
    %v442 = vpack.c.b16 %v433, %v432
    %v443 = vpack.c.b16 %v435, %v434
    %452 = vmatprep.subr.bf16.mxu0 0
    %453 = vmatpush1.bf16.msra.mxu0 %v443
    %454 = vmatprep.subr.bf16.mxu0 0
    %455 = vmatpush1.bf16.msra.mxu0 %v442
    %456 = vmatprep.subr.bf16.mxu0 0
    %457 = vmatpush1.bf16.msra.mxu0 %v441
    %458 = vmatprep.subr.bf16.mxu0 0
    %459 = vmatpush1.bf16.msra.mxu0 %v440
    %460 = vmatprep.subr.bf16.mxu0 0
    %461 = vmatpush1.bf16.msra.mxu0 %v439
    %462 = vmatprep.subr.bf16.mxu0 0
    %463 = vmatpush1.bf16.msra.mxu0 %v438
    %464 = vmatprep.subr.bf16.mxu0 0
    %465 = vmatpush1.bf16.msra.mxu0 %v437
    %466 = vmatprep.subr.bf16.mxu0 0
    %467 = vmatpush1.bf16.msra.mxu0 %v436
    %468 = vmatprep.subr.bf16.mxu0 0
    %469 = vmatpush2.bf16.msra.mxu0 0
    %470 = vmatprep.subr.bf16.mxu0 0
    %471 = vmatpush2.bf16.msra.mxu0 0
    %472 = vmatprep.subr.bf16.mxu0 0
    %473 = vmatpush2.bf16.msra.mxu0 0
    %474 = vmatprep.subr.bf16.mxu0 0
    %475 = vmatpush2.bf16.msra.mxu0 0
    %476 = vmatprep.subr.bf16.mxu0 0
    %477 = vmatpush2.bf16.msra.mxu0 0
    %478 = vmatprep.subr.bf16.mxu0 0
    %479 = vmatpush2.bf16.msra.mxu0 0
    %480 = vmatprep.subr.bf16.mxu0 0
    %481 = vmatpush2.bf16.msra.mxu0 0
    %482 = vmatprep.subr.bf16.mxu0 0
    %483 = vmatpush2.bf16.msra.mxu0 0
    %484 = vmatprep.mubr.bf16.mxu0 0
    %485 = vmatmul.mubr.bf16.gmra.mxu0 %v380
    %v486 = vpop.f32.mrf.mxu0
    %v487 = vadd.f32 %v402, %v486
    %v488 = vpop.f32.mrf.mxu0
    %v489 = vpop.f32.mrf.mxu0
    %v490 = vpop.f32.mrf.mxu0
    %491 = vdwg.mxu0
    %v492 = vmax.f32 %v487, 0.0
    %v493 = vpack.c.bf16 %v492, %v492
    %v494 = vld [vmem:[%s9] sm:$0xf]
    %v495 = vld [vmem:[%s9 + $0x4] sm:$0xf]
    %v496 = vld [vmem:[%s9 + $0x8] sm:$0xf]
    %v497 = vld [vmem:[%s9 + $0xc] sm:$0xf]
    %v498 = vld [vmem:[%s9 + $0x10] sm:$0xf]
    %v499 = vld [vmem:[%s9 + $0x14] sm:$0xf]
    %v500 = vld [vmem:[%s9 + $0x18] sm:$0xf]
    %v501 = vld [vmem:[%s9 + $0x1c] sm:$0xf]
    %v502 = vld [vmem:[%s9 + $0x20] sm:$0xf]
    %v503 = vld [vmem:[%s9 + $0x24] sm:$0xf]
    %v504 = vld [vmem:[%s9 + $0x28] sm:$0xf]
    %v505 = vld [vmem:[%s9 + $0x2c] sm:$0xf]
    %v506 = vld [vmem:[%s9 + $0x30] sm:$0xf]
    %v507 = vld [vmem:[%s9 + $0x34] sm:$0xf]
    %v508 = vld [vmem:[%s9 + $0x38] sm:$0xf]
    %v509 = vld [vmem:[%s9 + $0x3c] sm:$0xf]
    %v510 = vld [vmem:[%s10] sm:$0x1]
    %v512 = vlaneseq
    %v513 = vshrl.u32 %v512, 7
    %v514 = vsub.s32 0, %v513
    %v515 = vrot.slane %v510, %v514
    %v533 = vunpack.c.l.b16 %v494
    %v534 = vunpack.c.l.b16 %v495
    %v535 = vunpack.c.l.b16 %v496
    %v536 = vunpack.c.l.b16 %v497
    %v537 = vunpack.c.l.b16 %v498
    %v538 = vunpack.c.l.b16 %v499
    %v539 = vunpack.c.l.b16 %v500
    %v540 = vunpack.c.l.b16 %v501
    %v541 = vunpack.c.l.b16 %v502
    %v542 = vunpack.c.l.b16 %v503
    %v543 = vunpack.c.l.b16 %v504
    %v544 = vunpack.c.l.b16 %v505
    %v545 = vunpack.c.l.b16 %v506
    %v546 = vunpack.c.l.b16 %v507
    %v547 = vunpack.c.l.b16 %v508
    %v548 = vunpack.c.l.b16 %v509
    %v549 = vpack.c.b16 %v534, %v533
    %v550 = vpack.c.b16 %v536, %v535
    %v551 = vpack.c.b16 %v538, %v537
    %v552 = vpack.c.b16 %v540, %v539
    %v553 = vpack.c.b16 %v542, %v541
    %v554 = vpack.c.b16 %v544, %v543
    %v555 = vpack.c.b16 %v546, %v545
    %v556 = vpack.c.b16 %v548, %v547
    %565 = vmatprep.subr.bf16.mxu0 0
    %566 = vmatpush1.bf16.msra.mxu0 %v556
    %567 = vmatprep.subr.bf16.mxu0 0
    %568 = vmatpush1.bf16.msra.mxu0 %v555
    %569 = vmatprep.subr.bf16.mxu0 0
    %570 = vmatpush1.bf16.msra.mxu0 %v554
    %571 = vmatprep.subr.bf16.mxu0 0
    %572 = vmatpush1.bf16.msra.mxu0 %v553
    %573 = vmatprep.subr.bf16.mxu0 0
    %574 = vmatpush1.bf16.msra.mxu0 %v552
    %575 = vmatprep.subr.bf16.mxu0 0
    %576 = vmatpush1.bf16.msra.mxu0 %v551
    %577 = vmatprep.subr.bf16.mxu0 0
    %578 = vmatpush1.bf16.msra.mxu0 %v550
    %579 = vmatprep.subr.bf16.mxu0 0
    %580 = vmatpush1.bf16.msra.mxu0 %v549
    %581 = vmatprep.subr.bf16.mxu0 0
    %582 = vmatpush2.bf16.msra.mxu0 0
    %583 = vmatprep.subr.bf16.mxu0 0
    %584 = vmatpush2.bf16.msra.mxu0 0
    %585 = vmatprep.subr.bf16.mxu0 0
    %586 = vmatpush2.bf16.msra.mxu0 0
    %587 = vmatprep.subr.bf16.mxu0 0
    %588 = vmatpush2.bf16.msra.mxu0 0
    %589 = vmatprep.subr.bf16.mxu0 0
    %590 = vmatpush2.bf16.msra.mxu0 0
    %591 = vmatprep.subr.bf16.mxu0 0
    %592 = vmatpush2.bf16.msra.mxu0 0
    %593 = vmatprep.subr.bf16.mxu0 0
    %594 = vmatpush2.bf16.msra.mxu0 0
    %595 = vmatprep.subr.bf16.mxu0 0
    %596 = vmatpush2.bf16.msra.mxu0 0
    %597 = vmatprep.mubr.bf16.mxu0 0
    %598 = vmatmul.mubr.bf16.gmra.mxu0 %v493
    %v599 = vpop.f32.mrf.mxu0
    %v600 = vadd.f32 %v515, %v599
    %v601 = vpop.f32.mrf.mxu0
    %v602 = vpop.f32.mrf.mxu0
    %v603 = vpop.f32.mrf.mxu0
    %604 = vdwg.mxu0
    %vm605 = vcmask 31744
    %606 = vst.msk [vmem:[%s11] sm:$0xff] %vm605, %v600
    // Predicated region
    $region62: #{tpu_custom_call.1} parent=1 // pred_check
      _
    $region63: #{tpu_custom_call.1} parent=1 // pred_check_branch
      %608 = sbr.rel (0) target = $region65
    $region64: #{tpu_custom_call.1} parent=1 // pred_region
      _
    $region65: #{tpu_custom_call.1} parent=1 // pred_fallthru
      _
    // Predicated region
    $region66: #{tpu_custom_call.1} parent=1 // pred_check
      _
    $region67: #{tpu_custom_call.1} parent=1 // pred_check_branch
      %610 = sbr.rel (0) target = $region69
    $region68: #{tpu_custom_call.1} parent=1 // pred_region
      _
    $region69: #{tpu_custom_call.1} parent=1 // pred_fallthru
      _
    %611 = vsyncpa [#allocation3], 1
    %612 = vsyncpa [#allocation5], 1
    %613 = vsyncpa [#allocation8], 1

</llo_original>
